<compile_context>
chip_gen: v7x
topology: tpu7x:2x2x1
jax: 0.10.0
libtpu: 0.0.40
codegen_flags: <defaults>
</compile_context>

<pallas_src>
import math

import jax
import jax.numpy as jnp
from jax.experimental import pallas as pl
from jax.experimental.pallas import tpu as pltpu

_LANES = 128
_SUBLANES = 8


def _round_up(a: int, b: int) -> int:
    return -(-a // b) * b


def _bessel_rbf_kernel(x_ref, e_ref, f_ref, o_ref):
    """One row-block of BesselRBF, written directly in the final layout.

    x_ref : (TR, D)  f32   D consecutive distances per output row
    e_ref : (D, W)   bf16  0/1 selection matrix, W = D * n_rbf
    f_ref : (1, W)   f32   per-lane frequency ((p % n_rbf) + 1) * pi / cutoff
    o_ref : (TR, W)        o[r, i*n_rbf + k] = sin(x[r,i]*freqs[k]) / norm(x[r,i])
    """
    x = x_ref[...]                                                   # (TR, D)
    e = e_ref[...]                                                   # (D, W)

    # One exact reciprocal per distance, amortized over n_rbf outputs.
    # (Review: keep approx=False; bare approx=True would blow the 1e-5 tol.)
    inv = pl.reciprocal(jnp.where(x == 0.0, 1.0, x), approx=False)   # (TR, D)

    def expand(v):
        # Lane-expansion v[:, i] -> lanes [i*n_rbf, (i+1)*n_rbf) on the idle MXU.
        # v is split into three exact bf16 terms (hi/mid/lo), each matmul'd
        # against the 0/1 matrix with f32 accumulation; every product is exact,
        # so the f32 value is reconstructed bit-exactly regardless of how the
        # backend handles f32 matmul precision.
        acc = None
        rem = v
        for it in range(3):
            part = rem.astype(jnp.bfloat16)
            term = jnp.dot(part, e, preferred_element_type=jnp.float32)
            acc = term if acc is None else acc + term
            if it < 2:
                rem = rem - part.astype(jnp.float32)
        return acc                                                   # (TR, W) f32

    x_rep = expand(x)                                                # (TR, W)
    inv_rep = expand(inv)                                            # (TR, W)

    # No EUP sin on TPU: jnp.sin is ~15-20 VALU ops/element.  The Chebyshev
    # recurrence can't be vectorized here (each lane holds a different rbf
    # index), so we trade that for having removed the full-array transpose.
    y = jnp.sin(x_rep * f_ref[...]) * inv_rep
    o_ref[...] = y.astype(o_ref.dtype)


def _pick_tiling(r8: int, width: int, max_block_rows: int):
    """Row tile + VMEM limit from a per-generation VMEM budget."""
    try:
        vmem_cap = int(pltpu.get_tpu_info().vmem_capacity_bytes)  # 64 MiB v7x, 128 MiB v5e/v6e
    except Exception:  # pragma: no cover
        vmem_cap = 64 << 20                                       # v7x-safe fallback
    budget = int(vmem_cap * 0.55)

    # Per-row VMEM: double-buffered input block (minor dim pads to 128 lanes),
    # double-buffered output block, plus ~5 output-sized elementwise temporaries
    # (x_rep, inv_rep, matmul acc, product/sin) -- generous slack so large n_rbf
    # never VMEM-OOMs or collapses the pipeline.
    per_row = 2 * (_LANES * 4) + 7 * (width * 4)

    tr = min(max_block_rows, budget // per_row)
    tr = max(_SUBLANES, (tr // _SUBLANES) * _SUBLANES)

    # >= 2 grid steps whenever possible so the "parallel" axis can shard across
    # both v7x TensorCores (grid=(1,) would idle one core).
    if r8 >= 2 * _SUBLANES:
        tr = min(tr, _round_up(-(-r8 // 2), _SUBLANES))
    tr = min(tr, r8)

    vmem_limit = max(16 << 20, min(per_row * tr + (4 << 20), int(vmem_cap * 0.9)))
    return tr, vmem_limit


def bessel_rbf(inputs: jax.Array, n_rbf: int, cutoff: float, *,
               max_block_rows: int = 8192, out_dtype=jnp.float32):
    """Pallas BesselRBF forward. Returns inputs.shape + (n_rbf,)."""
    orig_shape = inputs.shape
    x = inputs.reshape(-1).astype(jnp.float32)
    n = int(x.shape[0])

    # D distances per output row; W = D * n_rbf lanes per row (multiple of 128).
    d_per_row = _LANES // math.gcd(n_rbf, _LANES)
    width = d_per_row * n_rbf

    r = max(1, pl.cdiv(n, d_per_row))
    r8 = _round_up(r, _SUBLANES)
    n_in = r8 * d_per_row
    if n_in != n:
        x = jnp.pad(x, (0, n_in - n))                  # small input-side pad only
    x2d = x.reshape(r8, d_per_row)

    # Tiny constant inputs: selection matrix and per-lane frequency row.
    lane = jnp.arange(width, dtype=jnp.int32)
    sel = (lane[None, :] // n_rbf) == jnp.arange(d_per_row, dtype=jnp.int32)[:, None]
    e_mat = sel.astype(jnp.bfloat16)                                    # (D, W)
    freqs_row = ((lane % n_rbf + 1).astype(jnp.float32) * math.pi / cutoff)[None, :]

    tr, vmem_limit = _pick_tiling(r8, width, max_block_rows)
    grid = (pl.cdiv(r8, tr),)                          # partial last block is OK

    out = pl.pallas_call(
        _bessel_rbf_kernel,
        out_shape=jax.ShapeDtypeStruct((r8, width), out_dtype),
        grid_spec=pltpu.PrefetchScalarGridSpec(
            num_scalar_prefetch=0,
            grid=grid,
            in_specs=[
                pl.BlockSpec((tr, d_per_row), lambda i: (i, 0)),
                pl.BlockSpec((d_per_row, width), lambda i: (0, 0)),
                pl.BlockSpec((1, width), lambda i: (0, 0)),
            ],
            out_specs=pl.BlockSpec((tr, width), lambda i: (i, 0)),
        ),
        compiler_params=pltpu.CompilerParams(
            dimension_semantics=("parallel",),
            vmem_limit_bytes=vmem_limit,
        ),
    )(x2d, e_mat, freqs_row)

    # Row-major (r8, W) == (r8*D, n_rbf): the reshape is free.  Only a ragged
    # tail needs trimming; there is no full-array transpose pass anymore.
    out_flat = out.reshape(n_in, n_rbf)
    if n_in != n:
        out_flat = out_flat[:n]
    return out_flat.reshape(*orig_shape, n_rbf)


def bessel_rbf_ref(inputs, n_rbf, cutoff):
    """Pure-JAX reference mirroring the torch forward."""
    freqs = jnp.arange(1, n_rbf + 1, dtype=jnp.float32) * math.pi / cutoff
    ax = inputs[..., None] * freqs
    norm = jnp.where(inputs == 0.0, 1.0, inputs)
    return jnp.sin(ax) / norm[..., None]


if __name__ == "__main__":
    # Case 1: aligned edge-distance tensor (batch=2, n_edges=64) with exact zeros.
    n_rbf, cutoff = 16, 5.0
    d1 = jax.random.uniform(jax.random.PRNGKey(0), (2, 64), jnp.float32, 0.0, cutoff)
    d1 = d1.at[0, 0].set(0.0).at[1, 3].set(0.0)
    y1 = jax.block_until_ready(bessel_rbf(d1, n_rbf, cutoff))
    r1 = bessel_rbf_ref(d1, n_rbf, cutoff)
    assert y1.shape == (2, 64, n_rbf), y1.shape
    assert jnp.allclose(y1, r1, atol=1e-5, rtol=1e-5), float(jnp.max(jnp.abs(y1 - r1)))

    # Case 2: ragged size, negatives, forced multi-step grid (small row tile).
    d2 = jax.random.uniform(jax.random.PRNGKey(1), (3, 7, 37), jnp.float32, -1.0, cutoff)
    d2 = d2.at[0, 0, 0].set(0.0)
    y2 = jax.block_until_ready(bessel_rbf(d2, n_rbf, cutoff, max_block_rows=8))
    r2 = bessel_rbf_ref(d2, n_rbf, cutoff)
    assert y2.shape == (3, 7, 37, n_rbf), y2.shape
    assert jnp.allclose(y2, r2, atol=1e-5, rtol=1e-5), float(jnp.max(jnp.abs(y2 - r2)))

    # Case 3: n_rbf that does not divide 128 (generic W = D*n_rbf path).
    n_rbf3, cutoff3 = 20, 3.5
    d3 = jax.random.uniform(jax.random.PRNGKey(2), (5, 11), jnp.float32, 0.0, cutoff3)
    y3 = jax.block_until_ready(bessel_rbf(d3, n_rbf3, cutoff3))
    r3 = bessel_rbf_ref(d3, n_rbf3, cutoff3)
    assert y3.shape == (5, 11, n_rbf3), y3.shape
    assert jnp.allclose(y3, r3, atol=1e-5, rtol=1e-5), float(jnp.max(jnp.abs(y3 - r3)))

    print("KERNEL_OK")
</pallas_src>

<mosaic_0001>
module attributes {stable_mosaic.version = 11 : i64} {
  func.func @_bessel_rbf_kernel(%arg0: i32, %arg1: memref<8x8xf32, #tpu.memory_space<vmem>>, %arg2: memref<8x128xbf16, #tpu.memory_space<vmem>>, %arg3: memref<1x128xf32, #tpu.memory_space<vmem>>, %arg4: memref<8x128xf32, #tpu.memory_space<vmem>>) attributes {dimension_semantics = [#tpu.dimension_semantics<parallel>], iteration_bounds = array<i64: 2>, scalar_prefetch = 0 : i64, scratch_operands = 0 : i64, tpu.core_type = #tpu.core_type<tc>, window_params = [{transform_indices = @transform_0, window_bounds = array<i64: 8, 8>}, {pipeline_mode = #tpu.pipeline_mode<synchronous>, transform_indices = @transform_1, window_bounds = array<i64: 8, 128>}, {pipeline_mode = #tpu.pipeline_mode<synchronous>, transform_indices = @transform_2, window_bounds = array<i64: 1, 128>}, {transform_indices = @transform_3, window_bounds = array<i64: 8, 128>}]} {
    %c0 = arith.constant 0 : index
    %c0_0 = arith.constant 0 : index
    %0 = vector.load %arg1[%c0, %c0_0] : memref<8x8xf32, #tpu.memory_space<vmem>>, vector<8x8xf32>
    %c0_1 = arith.constant 0 : index
    %c0_2 = arith.constant 0 : index
    %1 = vector.load %arg2[%c0_1, %c0_2] : memref<8x128xbf16, #tpu.memory_space<vmem>>, vector<8x128xbf16>
    %cst = arith.constant 0.000000e+00 : f32
    %2 = vector.broadcast %cst : f32 to vector<8x8xf32>
    %3 = arith.cmpf oeq, %0, %2 : vector<8x8xf32>
    %cst_3 = arith.constant 1.000000e+00 : f32
    %4 = vector.broadcast %cst_3 : f32 to vector<8x8xf32>
    %5 = arith.select %3, %4, %0 : vector<8x8xi1>, vector<8x8xf32>
    %6 = tpu.reciprocal %5 : vector<8x8xf32> -> vector<8x8xf32>
    %7 = arith.truncf %0 : vector<8x8xf32> to vector<8x8xbf16>
    %cst_4 = arith.constant dense<0.000000e+00> : vector<8x128xf32>
    %8 = tpu.matmul %7, %1, %cst_4 {dimension_numbers = #tpu.dot_dimension_numbers<[1], [0], [0], [1], [0, 0, 1, 1], [], []>} : vector<8x8xbf16>, vector<8x128xbf16>, vector<8x128xf32> -> vector<8x128xf32>
    %9 = arith.extf %7 : vector<8x8xbf16> to vector<8x8xf32>
    %10 = arith.subf %0, %9 : vector<8x8xf32>
    %11 = arith.truncf %10 : vector<8x8xf32> to vector<8x8xbf16>
    %cst_5 = arith.constant dense<0.000000e+00> : vector<8x128xf32>
    %12 = tpu.matmul %11, %1, %cst_5 {dimension_numbers = #tpu.dot_dimension_numbers<[1], [0], [0], [1], [0, 0, 1, 1], [], []>} : vector<8x8xbf16>, vector<8x128xbf16>, vector<8x128xf32> -> vector<8x128xf32>
    %13 = arith.addf %8, %12 : vector<8x128xf32>
    %14 = arith.extf %11 : vector<8x8xbf16> to vector<8x8xf32>
    %15 = arith.subf %10, %14 : vector<8x8xf32>
    %16 = arith.truncf %15 : vector<8x8xf32> to vector<8x8xbf16>
    %cst_6 = arith.constant dense<0.000000e+00> : vector<8x128xf32>
    %17 = tpu.matmul %16, %1, %cst_6 {dimension_numbers = #tpu.dot_dimension_numbers<[1], [0], [0], [1], [0, 0, 1, 1], [], []>} : vector<8x8xbf16>, vector<8x128xbf16>, vector<8x128xf32> -> vector<8x128xf32>
    %18 = arith.addf %13, %17 : vector<8x128xf32>
    %19 = arith.truncf %6 : vector<8x8xf32> to vector<8x8xbf16>
    %cst_7 = arith.constant dense<0.000000e+00> : vector<8x128xf32>
    %20 = tpu.matmul %19, %1, %cst_7 {dimension_numbers = #tpu.dot_dimension_numbers<[1], [0], [0], [1], [0, 0, 1, 1], [], []>} : vector<8x8xbf16>, vector<8x128xbf16>, vector<8x128xf32> -> vector<8x128xf32>
    %21 = arith.extf %19 : vector<8x8xbf16> to vector<8x8xf32>
    %22 = arith.subf %6, %21 : vector<8x8xf32>
    %23 = arith.truncf %22 : vector<8x8xf32> to vector<8x8xbf16>
    %cst_8 = arith.constant dense<0.000000e+00> : vector<8x128xf32>
    %24 = tpu.matmul %23, %1, %cst_8 {dimension_numbers = #tpu.dot_dimension_numbers<[1], [0], [0], [1], [0, 0, 1, 1], [], []>} : vector<8x8xbf16>, vector<8x128xbf16>, vector<8x128xf32> -> vector<8x128xf32>
    %25 = arith.addf %20, %24 : vector<8x128xf32>
    %26 = arith.extf %23 : vector<8x8xbf16> to vector<8x8xf32>
    %27 = arith.subf %22, %26 : vector<8x8xf32>
    %28 = arith.truncf %27 : vector<8x8xf32> to vector<8x8xbf16>
    %cst_9 = arith.constant dense<0.000000e+00> : vector<8x128xf32>
    %29 = tpu.matmul %28, %1, %cst_9 {dimension_numbers = #tpu.dot_dimension_numbers<[1], [0], [0], [1], [0, 0, 1, 1], [], []>} : vector<8x8xbf16>, vector<8x128xbf16>, vector<8x128xf32> -> vector<8x128xf32>
    %30 = arith.addf %25, %29 : vector<8x128xf32>
    %c0_10 = arith.constant 0 : index
    %c0_11 = arith.constant 0 : index
    %31 = vector.load %arg3[%c0_10, %c0_11] : memref<1x128xf32, #tpu.memory_space<vmem>>, vector<1x128xf32>
    %32 = vector.broadcast %31 : vector<1x128xf32> to vector<8x128xf32>
    %33 = arith.mulf %18, %32 : vector<8x128xf32>
    %34 = math.sin %33 : vector<8x128xf32>
    %35 = arith.mulf %34, %30 : vector<8x128xf32>
    %c0_12 = arith.constant 0 : index
    %c0_13 = arith.constant 0 : index
    %36 = vector.load %arg4[%c0_12, %c0_13] : memref<8x128xf32, #tpu.memory_space<vmem>>, vector<8x128xf32>
    tpu.vector_store %arg4[%c0_12, %c0_13], %35 {strides = array<i32>} : memref<8x128xf32, #tpu.memory_space<vmem>>, vector<8x128xf32>,
    return
  }
  func.func @transform_0(%arg0: i32) -> (i32, i32) {
    %c0_i32 = arith.constant 0 : i32
    %c0_i32_0 = arith.constant 0 : i32
    return %arg0, %c0_i32 : i32, i32
  }
  func.func @transform_1(%arg0: i32) -> (i32, i32) {
    %c0_i32 = arith.constant 0 : i32
    %c0_i32_0 = arith.constant 0 : i32
    %c0_i32_1 = arith.constant 0 : i32
    return %c0_i32, %c0_i32_0 : i32, i32
  }
  func.func @transform_2(%arg0: i32) -> (i32, i32) {
    %c0_i32 = arith.constant 0 : i32
    %c0_i32_0 = arith.constant 0 : i32
    %c0_i32_1 = arith.constant 0 : i32
    return %c0_i32, %c0_i32_0 : i32, i32
  }
  func.func @transform_3(%arg0: i32) -> (i32, i32) {
    %c0_i32 = arith.constant 0 : i32
    %c0_i32_0 = arith.constant 0 : i32
    return %arg0, %c0_i32 : i32, i32
  }
}

</mosaic_0001>

<llo_original>
// kernel: tpu_custom_call.1
$region0: #{tpu_custom_call.1}
  #allocation0 [shape = 'u32[]', space=smem, size = 0x4, offset = 0x4, fixed_abs, tag = 'smem constant byte address 0x4 - core index']
  #allocation1 [shape = 'u32[144,128]{1,0:T(1,128)}', space=vmem, size = 0x12000, scoped, tag = 'internal scratch']
  %s0 = inlined_call_operand.vmem [shape: f32[16,8], index: 0, kind: input, shape index: {}]
  %s1 = inlined_call_operand.vmem [shape: bf16[8,128], index: 1, kind: input, shape index: {}]
  %s2 = inlined_call_operand.vmem [shape: f32[1,128], index: 2, kind: input, shape index: {}]
  %s3 = inlined_call_operand.hbm [shape: f32[16,128], index: 3, kind: output, shape index: {}]
  %s4 = sld [smem:[#allocation0]]
  $region45: #{tpu_custom_call.1} parent=0
    _
  %s6 = ssub.s32 1, %s4
  %s7 = scalar_select 0, %s6, %s4
  $region1: #{tpu_custom_call.1} parent=0
    #allocation2 [shape = 'u8[8192]{0}', space=vmem, size = 0x2000, scoped, tag = 'output window, operand 0']
    #allocation3 [shape = 's32[2]{0}', space=sflag, size = 0x8, scoped, tag = 'scoped memory for tpu_custom_call.1']
    %8 = vsyncpa [#allocation3], 0
    %s9 = scalar_lea.sflag [#allocation3], 1
    %10 = vsyncpa %s9, 0
    loop: start=0, step=1, limit=4
    $region2: #{tpu_custom_call.1} parent=1 // loop_pre_header
      _
    $region3: #{tpu_custom_call.1} parent=1 // loop_header
      %s12 = sphi 0, %s16
      %p13 = scmp.ge.s32.totalorder %s12, 4
      %s22 = sphi 0, %s24
      %s25 = sphi 0, %s22
      %s26 = sphi 0, %s25
      %s42 = sphi 0, %s26
      %s46 = sphi 0, %s46
      %s48 = sphi 0, %s46
      %s49 = sphi 0, %s48
      %s63 = sphi 0, %s49
      %s67 = sphi 0, %s67
      %s69 = sphi 0, %s67
      %s70 = sphi 0, %s69
      %s84 = sphi 0, %s70
      %s90 = sphi 0, %s92
      %s93 = sphi 0, %s90
      %s94 = sphi 0, %s93
      %s110 = sphi 0, %s94
    $region4: #{tpu_custom_call.1} parent=1 // loop_header_branch
      %15 = sbr.rel (%p13) target = $region8
    $region5: #{tpu_custom_call.1} parent=1 // loop_body
      %s17 = ssub.s32 %s12, 1
      %s18 = ssub.s32 %s12, 2
      %s19 = sadd.s32 %s12, 1
      %s20 = ssub.s32 %s12, %s19
      %p21 = scmp.eq.s32.totalorder %s20, 0
      %s23 = sadd.s32 %s22, 1
      %s24 = scalar_select %p21, %s22, %s23
      %p27 = pneg %p21
      %p28 = scmp.eq.s32.totalorder %s12, 1
      %p29 = por %p27, %p28
      %p30 = scmp.ne.s32.totalorder %s22, %s25
      %p31 = scmp.eq.s32.totalorder %s12, 0
      %p32 = por %p30, %p31
      %p33 = scmp.ne.s32.totalorder %s22, %s25
      %p34 = scmp.eq.s32.totalorder %s17, 1
      %p35 = por %p33, %p34
      %p36 = scmp.ne.s32.totalorder %s25, %s26
      %p37 = scmp.eq.s32.totalorder %s17, 0
      %p38 = por %p36, %p37
      %p39 = scmp.ne.s32.totalorder %s25, %s26
      %p40 = scmp.eq.s32.totalorder %s18, 1
      %p41 = por %p39, %p40
      %p43 = scmp.ne.s32.totalorder %s26, %s42
      %p44 = scmp.eq.s32.totalorder %s18, 0
      %p45 = por %p43, %p44
      %s47 = sadd.s32 %s46, 1
      %p50 = scmp.eq.s32.totalorder %s12, 1
      %p51 = scmp.ne.s32.totalorder %s46, %s48
      %p52 = scmp.eq.s32.totalorder %s12, 0
      %p53 = por %p51, %p52
      %p54 = scmp.ne.s32.totalorder %s46, %s48
      %p55 = scmp.eq.s32.totalorder %s17, 1
      %p56 = por %p54, %p55
      %p57 = scmp.ne.s32.totalorder %s48, %s49
      %p58 = scmp.eq.s32.totalorder %s17, 0
      %p59 = por %p57, %p58
      %p60 = scmp.ne.s32.totalorder %s48, %s49
      %p61 = scmp.eq.s32.totalorder %s18, 1
      %p62 = por %p60, %p61
      %p64 = scmp.ne.s32.totalorder %s49, %s63
      %p65 = scmp.eq.s32.totalorder %s18, 0
      %p66 = por %p64, %p65
      %s68 = sadd.s32 %s67, 1
      %p71 = scmp.eq.s32.totalorder %s12, 1
      %p72 = scmp.ne.s32.totalorder %s67, %s69
      %p73 = scmp.eq.s32.totalorder %s12, 0
      %p74 = por %p72, %p73
      %p75 = scmp.ne.s32.totalorder %s67, %s69
      %p76 = scmp.eq.s32.totalorder %s17, 1
      %p77 = por %p75, %p76
      %p78 = scmp.ne.s32.totalorder %s69, %s70
      %p79 = scmp.eq.s32.totalorder %s17, 0
      %p80 = por %p78, %p79
      %p81 = scmp.ne.s32.totalorder %s69, %s70
      %p82 = scmp.eq.s32.totalorder %s18, 1
      %p83 = por %p81, %p82
      %p85 = scmp.ne.s32.totalorder %s70, %s84
      %p86 = scmp.eq.s32.totalorder %s18, 0
      %p87 = por %p85, %p86
      %s88 = ssub.s32 %s12, %s19
      %p89 = scmp.eq.s32.totalorder %s88, 0
      %s91 = sadd.s32 %s90, 1
      %s92 = scalar_select %p89, %s90, %s91
      %p95 = pneg %p89
      %p96 = scmp.eq.s32.totalorder %s12, 1
      %p97 = por %p95, %p96
      %p98 = scmp.ne.s32.totalorder %s90, %s93
      %p99 = scmp.eq.s32.totalorder %s12, 0
      %p100 = por %p98, %p99
      %p101 = scmp.ne.s32.totalorder %s90, %s93
      %p102 = scmp.eq.s32.totalorder %s17, 1
      %p103 = por %p101, %p102
      %p104 = scmp.ne.s32.totalorder %s93, %s94
      %p105 = scmp.eq.s32.totalorder %s17, 0
      %p106 = por %p104, %p105
      %p107 = scmp.ne.s32.totalorder %s93, %s94
      %p108 = scmp.eq.s32.totalorder %s18, 1
      %p109 = por %p107, %p108
      %p111 = scmp.ne.s32.totalorder %s94, %s110
      %p112 = scmp.eq.s32.totalorder %s18, 0
      %p113 = por %p111, %p112
      %p114 = scmp.le.s32.totalorder 1, %s12
      %p115 = scmp.lt.s32.totalorder %s12, 3
      %p116 = pnand %p114, %p115
      %p117 = pneg %p116
      // Predicated region
      $region9: #{tpu_custom_call.1} parent=5 // pred_check
        _
      $region10: #{tpu_custom_call.1} parent=5 // pred_check_branch
        %119 = sbr.rel (%p116) target = $region12
      $region11: #{tpu_custom_call.1} parent=5 // pred_region
        %s120 = ssub.s32 %s12, 1
        // Predicated region
        $region13: #{tpu_custom_call.1} parent=11 // pred_check
          %p121 = pneg %p59
        $region14: #{tpu_custom_call.1} parent=11 // pred_check_branch
          %123 = sbr.rel (%p121) target = $region16
        $region15: #{tpu_custom_call.1} parent=11 // pred_region
          _
        $region16: #{tpu_custom_call.1} parent=11 // pred_fallthru
          _
        // Predicated region
        $region17: #{tpu_custom_call.1} parent=11 // pred_check
          %p124 = pneg %p80
        $region18: #{tpu_custom_call.1} parent=11 // pred_check_branch
          %126 = sbr.rel (%p124) target = $region20
        $region19: #{tpu_custom_call.1} parent=11 // pred_region
          _
        $region20: #{tpu_custom_call.1} parent=11 // pred_fallthru
          _
      $region12: #{tpu_custom_call.1} parent=5 // pred_fallthru
        _
      %p127 = scmp.lt.s32.totalorder %s12, 2
      // Predicated region
      $region21: #{tpu_custom_call.1} parent=5 // pred_check
        %p128 = pneg %p127
      $region22: #{tpu_custom_call.1} parent=5 // pred_check_branch
        %130 = sbr.rel (%p128) target = $region24
      $region23: #{tpu_custom_call.1} parent=5 // pred_region
        // Predicated region
        $region25: #{tpu_custom_call.1} parent=23 // pred_check
          %p131 = pneg %p32
        $region26: #{tpu_custom_call.1} parent=23 // pred_check_branch
          %133 = sbr.rel (%p131) target = $region28
        $region27: #{tpu_custom_call.1} parent=23 // pred_region
          %p134 = scmp.lt.s32.totalorder %s12, 1
          %s135 = scalar_select %p134, %s12, 1
          %s136 = smul.addr %s135, 8
          %s137 = scalar_lea.vmem %s0, %s136
        $region28: #{tpu_custom_call.1} parent=23 // pred_fallthru
          _
      $region24: #{tpu_custom_call.1} parent=5 // pred_fallthru
        _
      %p138 = scmp.le.s32.totalorder 1, %s12
      %p139 = scmp.lt.s32.totalorder %s12, 3
      %p140 = pnand %p138, %p139
      %p141 = pneg %p140
      // Predicated region
      $region29: #{tpu_custom_call.1} parent=5 // pred_check
        _
      $region30: #{tpu_custom_call.1} parent=5 // pred_check_branch
        %143 = sbr.rel (%p140) target = $region32
      $region31: #{tpu_custom_call.1} parent=5 // pred_region
        %s144 = ssub.s32 %s12, 1
        %p145 = scmp.lt.s32.totalorder %s17, 1
        %s146 = scalar_select %p145, %s17, 1
        %s147 = smul.addr %s146, 8
        %s148 = scalar_lea.vmem %s0, %s147
        %p149 = pneg %p38
        %p150 = pneg %p35
        %p151 = pneg %p59
        %p152 = pneg %p56
        %p153 = pneg %p80
        %p154 = pneg %p77
        %p155 = pneg %p106
        %p156 = pneg %p103
        %s157 = sand.u32 %s93, 1
        %s158 = scalar_lea.sflag [#allocation3], %s157
        %s159 = sand.u32 %s93, 1
        %s160 = smul.addr %s159, 8
        %s161 = scalar_lea.vmem [#allocation2], %s160
        %p162 = scmp.lt.s32.totalorder %s17, 1
        %s163 = scalar_select %p162, %s17, 1
        %s164 = smul.addr %s163, 8
        %s165 = scalar_lea.vmem %s0, %s164
        %v167 = vld [vmem:[%s165] sm:$0xff]
        %v168 = vld [vmem:[%s1] sm:$0xf]
        %vm169 = vcmp.eq.f32.partialorder %v167, 0.0
        %v170 = vsel %vm169, 1.0, %v167
        %v171 = vrcp.pop %v170
        %v172 = vpack.c.bf16 %v167, %v167
        %v173 = vunpack.c.l.bf16 %v172
        %v174 = vsub.f32 %v167, %v173
        %v175 = vpack.c.bf16 %v174, %v174
        %vm176 = vcmask 64512
        %v178 = vsel %vm176, %v175, 0
        %vm180 = vcmask 1043456
        %v182 = vsel %vm180, %v168, 0
        %184 = vmatprep.subr.bf16.mxu0 0
        %185 = vmatpush1.bf16.msra.mxu0 %v182
        %186 = vmatprep.subr.bf16.mxu0 0
        %187 = vmatpush1.bf16.msra.mxu0 0
        %188 = vmatprep.subr.bf16.mxu0 0
        %189 = vmatpush1.bf16.msra.mxu0 0
        %190 = vmatprep.subr.bf16.mxu0 0
        %191 = vmatpush1.bf16.msra.mxu0 0
        %192 = vmatprep.subr.bf16.mxu0 0
        %193 = vmatpush1.bf16.msra.mxu0 0
        %194 = vmatprep.subr.bf16.mxu0 0
        %195 = vmatpush1.bf16.msra.mxu0 0
        %196 = vmatprep.subr.bf16.mxu0 0
        %197 = vmatpush1.bf16.msra.mxu0 0
        %198 = vmatprep.subr.bf16.mxu0 0
        %199 = vmatpush1.bf16.msra.mxu0 0
        %200 = vmatprep.subr.bf16.mxu0 0
        %201 = vmatpush1.bf16.msra.mxu0 0
        %202 = vmatprep.subr.bf16.mxu0 0
        %203 = vmatpush1.bf16.msra.mxu0 0
        %204 = vmatprep.subr.bf16.mxu0 0
        %205 = vmatpush1.bf16.msra.mxu0 0
        %206 = vmatprep.subr.bf16.mxu0 0
        %207 = vmatpush1.bf16.msra.mxu0 0
        %208 = vmatprep.subr.bf16.mxu0 0
        %209 = vmatpush1.bf16.msra.mxu0 0
        %210 = vmatprep.subr.bf16.mxu0 0
        %211 = vmatpush1.bf16.msra.mxu0 0
        %212 = vmatprep.subr.bf16.mxu0 0
        %213 = vmatpush1.bf16.msra.mxu0 0
        %214 = vmatprep.subr.bf16.mxu0 0
        %215 = vmatpush1.bf16.msra.mxu0 0
        %216 = vmatprep.mubr.bf16.mxu0 0
        %217 = vmatmul.mubr.bf16.gmra.mrb[0].mxu0 %v178
        %v218 = vpop.f32.mrb[0].mxu0
        %v219 = vadd.f32 0.0, %v218
        %v220 = vpop.f32.mrb[0].mxu0
        %v221 = vpop.f32.mrb[0].mxu0
        %v222 = vpop.f32.mrb[0].mxu0
        %223 = vdwg.mxu0
        %v225 = vsel %vm176, %v172, 0
        %227 = vmatprep.subr.bf16.mxu0 0
        %228 = vmatpush1.bf16.msra.mxu0 %v182
        %229 = vmatprep.subr.bf16.mxu0 0
        %230 = vmatpush1.bf16.msra.mxu0 0
        %231 = vmatprep.subr.bf16.mxu0 0
        %232 = vmatpush1.bf16.msra.mxu0 0
        %233 = vmatprep.subr.bf16.mxu0 0
        %234 = vmatpush1.bf16.msra.mxu0 0
        %235 = vmatprep.subr.bf16.mxu0 0
        %236 = vmatpush1.bf16.msra.mxu0 0
        %237 = vmatprep.subr.bf16.mxu0 0
        %238 = vmatpush1.bf16.msra.mxu0 0
        %239 = vmatprep.subr.bf16.mxu0 0
        %240 = vmatpush1.bf16.msra.mxu0 0
        %241 = vmatprep.subr.bf16.mxu0 0
        %242 = vmatpush1.bf16.msra.mxu0 0
        %243 = vmatprep.subr.bf16.mxu0 0
        %244 = vmatpush1.bf16.msra.mxu0 0
        %245 = vmatprep.subr.bf16.mxu0 0
        %246 = vmatpush1.bf16.msra.mxu0 0
        %247 = vmatprep.subr.bf16.mxu0 0
        %248 = vmatpush1.bf16.msra.mxu0 0
        %249 = vmatprep.subr.bf16.mxu0 0
        %250 = vmatpush1.bf16.msra.mxu0 0
        %251 = vmatprep.subr.bf16.mxu0 0
        %252 = vmatpush1.bf16.msra.mxu0 0
        %253 = vmatprep.subr.bf16.mxu0 0
        %254 = vmatpush1.bf16.msra.mxu0 0
        %255 = vmatprep.subr.bf16.mxu0 0
        %256 = vmatpush1.bf16.msra.mxu0 0
        %257 = vmatprep.subr.bf16.mxu0 0
        %258 = vmatpush1.bf16.msra.mxu0 0
        %259 = vmatprep.mubr.bf16.mxu0 0
        %260 = vmatmul.mubr.bf16.gmra.mrb[0].mxu0 %v225
        %v261 = vpop.f32.mrb[0].mxu0
        %v262 = vadd.f32 %v219, %v261
        %v263 = vpop.f32.mrb[0].mxu0
        %v264 = vpop.f32.mrb[0].mxu0
        %v265 = vpop.f32.mrb[0].mxu0
        %266 = vdwg.mxu0
        %v267 = vunpack.c.l.bf16 %v175
        %v268 = vsub.f32 %v174, %v267
        %v269 = vpack.c.bf16 %v268, %v268
        %v271 = vsel %vm176, %v269, 0
        %273 = vmatprep.subr.bf16.mxu0 0
        %274 = vmatpush1.bf16.msra.mxu0 %v182
        %275 = vmatprep.subr.bf16.mxu0 0
        %276 = vmatpush1.bf16.msra.mxu0 0
        %277 = vmatprep.subr.bf16.mxu0 0
        %278 = vmatpush1.bf16.msra.mxu0 0
        %279 = vmatprep.subr.bf16.mxu0 0
        %280 = vmatpush1.bf16.msra.mxu0 0
        %281 = vmatprep.subr.bf16.mxu0 0
        %282 = vmatpush1.bf16.msra.mxu0 0
        %283 = vmatprep.subr.bf16.mxu0 0
        %284 = vmatpush1.bf16.msra.mxu0 0
        %285 = vmatprep.subr.bf16.mxu0 0
        %286 = vmatpush1.bf16.msra.mxu0 0
        %287 = vmatprep.subr.bf16.mxu0 0
        %288 = vmatpush1.bf16.msra.mxu0 0
        %289 = vmatprep.subr.bf16.mxu0 0
        %290 = vmatpush1.bf16.msra.mxu0 0
        %291 = vmatprep.subr.bf16.mxu0 0
        %292 = vmatpush1.bf16.msra.mxu0 0
        %293 = vmatprep.subr.bf16.mxu0 0
        %294 = vmatpush1.bf16.msra.mxu0 0
        %295 = vmatprep.subr.bf16.mxu0 0
        %296 = vmatpush1.bf16.msra.mxu0 0
        %297 = vmatprep.subr.bf16.mxu0 0
        %298 = vmatpush1.bf16.msra.mxu0 0
        %299 = vmatprep.subr.bf16.mxu0 0
        %300 = vmatpush1.bf16.msra.mxu0 0
        %301 = vmatprep.subr.bf16.mxu0 0
        %302 = vmatpush1.bf16.msra.mxu0 0
        %303 = vmatprep.subr.bf16.mxu0 0
        %304 = vmatpush1.bf16.msra.mxu0 0
        %305 = vmatprep.mubr.bf16.mxu0 0
        %306 = vmatmul.mubr.bf16.gmra.mrb[0].mxu0 %v271
        %v307 = vpop.f32.mrb[0].mxu0
        %v308 = vadd.f32 0.0, %v307
        %v309 = vpop.f32.mrb[0].mxu0
        %v310 = vpop.f32.mrb[0].mxu0
        %v311 = vpop.f32.mrb[0].mxu0
        %312 = vdwg.mxu0
        %v313 = vadd.f32 %v262, %v308
        %v314 = vpack.c.bf16 %v171, %v171
        %v315 = vunpack.c.l.bf16 %v314
        %v316 = vsub.f32 %v171, %v315
        %v317 = vpack.c.bf16 %v316, %v316
        %v319 = vsel %vm176, %v317, 0
        %321 = vmatprep.subr.bf16.mxu0 0
        %322 = vmatpush1.bf16.msra.mxu0 %v182
        %323 = vmatprep.subr.bf16.mxu0 0
        %324 = vmatpush1.bf16.msra.mxu0 0
        %325 = vmatprep.subr.bf16.mxu0 0
        %326 = vmatpush1.bf16.msra.mxu0 0
        %327 = vmatprep.subr.bf16.mxu0 0
        %328 = vmatpush1.bf16.msra.mxu0 0
        %329 = vmatprep.subr.bf16.mxu0 0
        %330 = vmatpush1.bf16.msra.mxu0 0
        %331 = vmatprep.subr.bf16.mxu0 0
        %332 = vmatpush1.bf16.msra.mxu0 0
        %333 = vmatprep.subr.bf16.mxu0 0
        %334 = vmatpush1.bf16.msra.mxu0 0
        %335 = vmatprep.subr.bf16.mxu0 0
        %336 = vmatpush1.bf16.msra.mxu0 0
        %337 = vmatprep.subr.bf16.mxu0 0
        %338 = vmatpush1.bf16.msra.mxu0 0
        %339 = vmatprep.subr.bf16.mxu0 0
        %340 = vmatpush1.bf16.msra.mxu0 0
        %341 = vmatprep.subr.bf16.mxu0 0
        %342 = vmatpush1.bf16.msra.mxu0 0
        %343 = vmatprep.subr.bf16.mxu0 0
        %344 = vmatpush1.bf16.msra.mxu0 0
        %345 = vmatprep.subr.bf16.mxu0 0
        %346 = vmatpush1.bf16.msra.mxu0 0
        %347 = vmatprep.subr.bf16.mxu0 0
        %348 = vmatpush1.bf16.msra.mxu0 0
        %349 = vmatprep.subr.bf16.mxu0 0
        %350 = vmatpush1.bf16.msra.mxu0 0
        %351 = vmatprep.subr.bf16.mxu0 0
        %352 = vmatpush1.bf16.msra.mxu0 0
        %353 = vmatprep.mubr.bf16.mxu0 0
        %354 = vmatmul.mubr.bf16.gmra.mrb[0].mxu0 %v319
        %v355 = vpop.f32.mrb[0].mxu0
        %v356 = vadd.f32 0.0, %v355
        %v357 = vpop.f32.mrb[0].mxu0
        %v358 = vpop.f32.mrb[0].mxu0
        %v359 = vpop.f32.mrb[0].mxu0
        %360 = vdwg.mxu0
        %v362 = vsel %vm176, %v314, 0
        %364 = vmatprep.subr.bf16.mxu0 0
        %365 = vmatpush1.bf16.msra.mxu0 %v182
        %366 = vmatprep.subr.bf16.mxu0 0
        %367 = vmatpush1.bf16.msra.mxu0 0
        %368 = vmatprep.subr.bf16.mxu0 0
        %369 = vmatpush1.bf16.msra.mxu0 0
        %370 = vmatprep.subr.bf16.mxu0 0
        %371 = vmatpush1.bf16.msra.mxu0 0
        %372 = vmatprep.subr.bf16.mxu0 0
        %373 = vmatpush1.bf16.msra.mxu0 0
        %374 = vmatprep.subr.bf16.mxu0 0
        %375 = vmatpush1.bf16.msra.mxu0 0
        %376 = vmatprep.subr.bf16.mxu0 0
        %377 = vmatpush1.bf16.msra.mxu0 0
        %378 = vmatprep.subr.bf16.mxu0 0
        %379 = vmatpush1.bf16.msra.mxu0 0
        %380 = vmatprep.subr.bf16.mxu0 0
        %381 = vmatpush1.bf16.msra.mxu0 0
        %382 = vmatprep.subr.bf16.mxu0 0
        %383 = vmatpush1.bf16.msra.mxu0 0
        %384 = vmatprep.subr.bf16.mxu0 0
        %385 = vmatpush1.bf16.msra.mxu0 0
        %386 = vmatprep.subr.bf16.mxu0 0
        %387 = vmatpush1.bf16.msra.mxu0 0
        %388 = vmatprep.subr.bf16.mxu0 0
        %389 = vmatpush1.bf16.msra.mxu0 0
        %390 = vmatprep.subr.bf16.mxu0 0
        %391 = vmatpush1.bf16.msra.mxu0 0
        %392 = vmatprep.subr.bf16.mxu0 0
        %393 = vmatpush1.bf16.msra.mxu0 0
        %394 = vmatprep.subr.bf16.mxu0 0
        %395 = vmatpush1.bf16.msra.mxu0 0
        %396 = vmatprep.mubr.bf16.mxu0 0
        %397 = vmatmul.mubr.bf16.gmra.mrb[0].mxu0 %v362
        %v398 = vpop.f32.mrb[0].mxu0
        %v399 = vadd.f32 %v356, %v398
        %v400 = vpop.f32.mrb[0].mxu0
        %v401 = vpop.f32.mrb[0].mxu0
        %v402 = vpop.f32.mrb[0].mxu0
        %403 = vdwg.mxu0
        %v404 = vunpack.c.l.bf16 %v317
        %v405 = vsub.f32 %v316, %v404
        %v406 = vpack.c.bf16 %v405, %v405
        %v408 = vsel %vm176, %v406, 0
        %410 = vmatprep.subr.bf16.mxu0 0
        %411 = vmatpush1.bf16.msra.mxu0 %v182
        %412 = vmatprep.subr.bf16.mxu0 0
        %413 = vmatpush1.bf16.msra.mxu0 0
        %414 = vmatprep.subr.bf16.mxu0 0
        %415 = vmatpush1.bf16.msra.mxu0 0
        %416 = vmatprep.subr.bf16.mxu0 0
        %417 = vmatpush1.bf16.msra.mxu0 0
        %418 = vmatprep.subr.bf16.mxu0 0
        %419 = vmatpush1.bf16.msra.mxu0 0
        %420 = vmatprep.subr.bf16.mxu0 0
        %421 = vmatpush1.bf16.msra.mxu0 0
        %422 = vmatprep.subr.bf16.mxu0 0
        %423 = vmatpush1.bf16.msra.mxu0 0
        %424 = vmatprep.subr.bf16.mxu0 0
        %425 = vmatpush1.bf16.msra.mxu0 0
        %426 = vmatprep.subr.bf16.mxu0 0
        %427 = vmatpush1.bf16.msra.mxu0 0
        %428 = vmatprep.subr.bf16.mxu0 0
        %429 = vmatpush1.bf16.msra.mxu0 0
        %430 = vmatprep.subr.bf16.mxu0 0
        %431 = vmatpush1.bf16.msra.mxu0 0
        %432 = vmatprep.subr.bf16.mxu0 0
        %433 = vmatpush1.bf16.msra.mxu0 0
        %434 = vmatprep.subr.bf16.mxu0 0
        %435 = vmatpush1.bf16.msra.mxu0 0
        %436 = vmatprep.subr.bf16.mxu0 0
        %437 = vmatpush1.bf16.msra.mxu0 0
        %438 = vmatprep.subr.bf16.mxu0 0
        %439 = vmatpush1.bf16.msra.mxu0 0
        %440 = vmatprep.subr.bf16.mxu0 0
        %441 = vmatpush1.bf16.msra.mxu0 0
        %442 = vmatprep.mubr.bf16.mxu0 0
        %443 = vmatmul.mubr.bf16.gmra.mrb[0].mxu0 %v408
        %v444 = vpop.f32.mrb[0].mxu0
        %v445 = vadd.f32 0.0, %v444
        %v446 = vpop.f32.mrb[0].mxu0
        %v447 = vpop.f32.mrb[0].mxu0
        %v448 = vpop.f32.mrb[0].mxu0
        %449 = vdwg.mxu0
        %v450 = vadd.f32 %v399, %v445
        %v451 = vld [vmem:[%s2] sm:$0x1]
        %v453 = vlaneseq
        %v454 = vshrl.u32 %v453, 7
        %v455 = vsub.s32 0, %v454
        %v456 = vrot.slane %v451, %v455
        %v458 = vmul.f32 %v313, %v456
        %v459 = vand.u32 2147483647, %v458
        %vm460 = vcmp.le.f32.partialorder %v459, 0.7853982
        %vm461 = vcmp.lt.s32.totalorder %v458, 0
        %v462 = vand.u32 %v458, 2139095040
        %v463 = vshrl.u32 %v462, 23
        %v464 = vsub.s32 %v463, 127
        %v465 = vand.u32 2147483647, %v458
        %v466 = vand.u32 %v465, 8388607
        %v467 = vor.u32 %v466, 8388608
        %v468 = vsub.s32 0, %v467
        %v469 = vadd.s32 %v464, 1
        %vm470 = vcmp.gt.s32.totalorder %v469, 0
        %v471 = vsel %vm470, %v469, 0
        %v472 = vshrl.u32 %v471, 5
        %v473 = vand.u32 %v471, 31
        %v474 = vsub.s32 32, %v473
        %v475 = vshrl.u32 683565275, %v474
        %v476 = vshll.u32 683565275, %v473
        %v477 = vshrl.u32 2475754826, %v474
        %v478 = vor.u32 %v476, %v477
        %v479 = vshll.u32 2475754826, %v473
        %v480 = vshrl.u32 2131351028, %v474
        %v481 = vor.u32 %v479, %v480
        %v482 = vshll.u32 2131351028, %v473
        %v483 = vshrl.u32 2102212464, %v474
        %v484 = vor.u32 %v482, %v483
        %v485 = vshll.u32 2102212464, %v473
        %v486 = vshrl.u32 920167782, %v474
        %v487 = vor.u32 %v485, %v486
        %v488 = vshll.u32 920167782, %v473
        %v489 = vshrl.u32 1326507024, %v474
        %v490 = vor.u32 %v488, %v489
        %vm491 = vcmp.lt.s32.totalorder %v472, 1
        %vm492 = vcmp.lt.s32.totalorder %v472, 2
        %vm493 = vcmp.lt.s32.totalorder %v472, 3
        %vm494 = vcmp.lt.s32.totalorder %v472, 4
        %v495 = vsel %vm491, %v475, %v478
        %v496 = vsel %vm494, %v484, 2102212464
        %v497 = vsel %vm493, %v481, %v496
        %v498 = vsel %vm492, %v495, %v497
        %v499 = vsel %vm491, %v478, %v481
        %v500 = vsel %vm494, %v487, 920167782
        %v501 = vsel %vm493, %v484, %v500
        %v502 = vsel %vm492, %v499, %v501
        %v503 = vsel %vm491, %v481, %v484
        %v504 = vsel %vm494, %v490, 1326507024
        %v505 = vsel %vm493, %v487, %v504
        %v506 = vsel %vm492, %v503, %v505
        %v507 = vshll.u32 %v467, 8
        %v508 = vmul.u32.u64.compose %v507, %v506
        %v509 = vextract.low.u32 %v508
        %v510 = vextract.high.u32 %v508
        %v511 = vmul.u32.u64.compose %v507, %v502
        %v512 = vextract.low.u32 %v511
        %v513 = vextract.high.u32 %v511
        %v514 = vmul.u32 %v507, %v498
        %v515 = vadd.s32 %v510, %v512
        %vm516 = vc.u32 %v510, %v512
        %v517 = vadd.s32 %v513, 1
        %v518 = vsel %vm516, %v517, %v513
        %v519 = vadd.s32 %v514, %v518
        %v520 = vadd.s32 %v519, 536870912
        %v521 = vshrl.u32 %v520, 30
        %v522 = vshll.u32 %v521, 30
        %v523 = vsub.s32 %v519, %v522
        %vm524 = vcmp.lt.s32.totalorder %v523, 0
        %v525 = vsub.s32 0, %v523
        %v526 = vsel %vm524, %v525, %v523
        %v527 = vclz %v526
        %v528 = vsub.s32 %v527, 2
        %vm529 = vcmp.gt.s32.totalorder 0, %v528
        %v530 = vsel %vm529, 0, %v528
        %v531 = vsub.s32 32, %v530
        %v532 = vshll.u32 %v523, %v530
        %v533 = vshrl.u32 %v515, %v531
        %v534 = vor.u32 %v532, %v533
        %v535 = vsub.s32 4294967266, %v530
        %v536 = vadd.s32 %v535, 127
        %v537 = vshll.u32 %v536, 23
        %v538 = vor.u32 4788187, %v537
        %v539 = vand.u32 2147483647, %v538
        %v541 = vcvt.s32.f32 %v534
        %v542 = vmul.f32 %v541, %v539
        %v543 = vxor.u32 %v542, 2147483648
        %v544 = vsel %vm461, %v543, %v542
        %v545 = vsub.s32 4, %v521
        %v546 = vsel %vm461, %v545, %v521
        %v547 = vsel %vm460, %v458, %v544
        %v548 = vsel %vm460, 0, %v546
        %v549 = vcosq.f32.pop %v547
        %v550 = vsinq.f32.pop %v547
        %vm551 = vweird.f32 %v458
        %v552 = vadd.s32 %v548, 3
        %v553 = vand.u32 %v552, 3
        %vm554 = vcmp.lt.s32.totalorder %v553, 2
        %vm555 = vcmp.eq.s32.totalorder %v553, 0
        %v556 = vxor.u32 %v550, 2147483648
        %v557 = vsel %vm555, %v549, %v556
        %vm558 = vcmp.eq.s32.totalorder %v553, 2
        %v559 = vxor.u32 %v549, 2147483648
        %v560 = vsel %vm558, %v559, %v550
        %v561 = vsel %vm554, %v557, %v560
        %v562 = vsel %vm551, nan, %v561
        %v563 = vmul.f32 %v562, %v450
        %564 = vst [vmem:[%s161] sm:$0xff] %v563
        %s565 = sand.u32 %s93, 1
        %s566 = scalar_lea.sflag [#allocation3], %s565
        %s567 = sand.u32 %s93, 1
        %s568 = smul.addr %s567, 8
        %s569 = scalar_lea.vmem [#allocation2], %s568
        // Predicated region
        $region33: #{tpu_custom_call.1} parent=31 // pred_check
          %p570 = pneg %p103
        $region34: #{tpu_custom_call.1} parent=31 // pred_check_branch
          %572 = sbr.rel (%p570) target = $region36
        $region35: #{tpu_custom_call.1} parent=31 // pred_region
          %s574 = ssub.s32 128, 128
          %575 = vsyncadd %s566, %s574
          %s576 = smul.addr %s17, 128
          %s577 = scalar_lea.hbm %s3, %s576
          %s579 = sshll.u32 %s569, 4
          %s580 = int_to_ptr.vmem [resolvable:$true] %s579
          %582 = dma.vmem_to_hbm [thread:$0]  %s580, 128, %s577, %s566
        $region36: #{tpu_custom_call.1} parent=31 // pred_fallthru
          _
      $region32: #{tpu_custom_call.1} parent=5 // pred_fallthru
        _
      %p583 = scmp.le.s32.totalorder 2, %s12
      // Predicated region
      $region37: #{tpu_custom_call.1} parent=5 // pred_check
        %p584 = pneg %p583
      $region38: #{tpu_custom_call.1} parent=5 // pred_check_branch
        %586 = sbr.rel (%p584) target = $region40
      $region39: #{tpu_custom_call.1} parent=5 // pred_region
        %s587 = ssub.s32 %s12, 2
        // Predicated region
        $region41: #{tpu_custom_call.1} parent=39 // pred_check
          %p588 = pneg %p109
        $region42: #{tpu_custom_call.1} parent=39 // pred_check_branch
          %590 = sbr.rel (%p588) target = $region44
        $region43: #{tpu_custom_call.1} parent=39 // pred_region
          %s591 = sand.u32 %s94, 1
          %s592 = scalar_lea.sflag [#allocation3], %s591
          %s593 = sand.u32 %s94, 1
          %s594 = smul.addr %s593, 8
          %s595 = scalar_lea.vmem [#allocation2], %s594
          %596 = dma.done %s592, 128
        $region44: #{tpu_custom_call.1} parent=39 // pred_fallthru
          _
      $region40: #{tpu_custom_call.1} parent=5 // pred_fallthru
        _
    $region6: #{tpu_custom_call.1} parent=1 // loop_footer
      %s16 = sadd.s32 1, %s12
    $region7: #{tpu_custom_call.1} parent=1 // loop_footer_branch
      %11 = sbr.rel target = $region3
    $region8: #{tpu_custom_call.1} parent=1 // loop_exit
      _
    %597 = vsyncpa [#allocation3], 1
    %s598 = scalar_lea.sflag [#allocation3], 1
    %599 = vsyncpa %s598, 1

</llo_original>
